<compile_context>
chip_gen: v7x
topology: tpu7x:2x2x1
jax: 0.10.0
libtpu: 0.0.40
codegen_flags: <defaults>
</compile_context>

<pallas_src>
import math
import numpy as np
import jax
import jax.numpy as jnp
from jax import lax
from jax.experimental import pallas as pl
from jax.experimental.pallas import tpu as pltpu

_NEG_BIG = -1e30  # stands in for -inf; avoids NaN rows on fully padded queries


def _round_up(x: int, m: int) -> int:
    return ((x + m - 1) // m) * m


def _pick_tiles(B, Lq_p, Lk_p, Dq_p, Dv_p, has_mask,
                vmem_budget_bytes=8 * 1024 * 1024):
    """Pick (batch_tile, query_tile) so double-buffered f32 blocks fit VMEM."""
    def per_batch_bytes(tq):
        return 2 * 4 * (  # x2 double buffering, f32
            tq * Dq_p + Lk_p * Dq_p + Lk_p * Dv_p          # q, k, v blocks
            + tq * Lk_p + tq * Dv_p                        # attn, ctx blocks
            + (tq * Lk_p if has_mask else 0))              # mask block

    tq = min(Lq_p, 256)                                    # multiple of 8
    while tq > 8 and per_batch_bytes(tq) > vmem_budget_bytes:
        tq = max(8, _round_up(tq // 2, 8))

    bt = max(1, min(B, vmem_budget_bytes // max(per_batch_bytes(tq), 1)))
    if B >= 2:
        # leave >= 2 grid steps along batch when possible (v7x has 2 TCs)
        bt = min(bt, _round_up(B, 2) // 2)
    return bt, tq


def scaled_dot_product_attention(q, k, v, scale=None, attn_mask=None):
    """q: [B, Lq, Dq], k: [B, Lk, Dk], v: [B, Lk, Dv] (Dq == Dk).

    Returns (context [B, Lq, Dv], attention [B, Lq, Lk]) in float32,
    matching the PyTorch module's forward (dropout p=0.0 => identity).
    """
    q = jnp.asarray(q, jnp.float32)
    k = jnp.asarray(k, jnp.float32)
    v = jnp.asarray(v, jnp.float32)
    B, Lq, Dq = q.shape
    Bk, Lk, Dk = k.shape
    Bv, Lv, Dv = v.shape
    assert B == Bk == Bv and Dq == Dk and Lk == Lv

    # PyTorch does `if scale:` (truthiness) before multiplying.
    apply_scale = bool(scale)
    scale_val = float(scale) if apply_scale else 1.0
    has_mask = attn_mask is not None

    # ---- pad to TPU lane/sublane friendly sizes (lane-dense stores) ----
    Lq_p = _round_up(Lq, 8)      # sublane axis of q / attention / context
    Lk_p = _round_up(Lk, 128)    # lane axis of attention
    Dq_p = _round_up(Dq, 128)    # lane axis of q / k
    Dv_p = _round_up(Dv, 128)    # lane axis of v / context

    bt, tq = _pick_tiles(B, Lq_p, Lk_p, Dq_p, Dv_p, has_mask)
    B_p = _round_up(B, bt)
    Lq_pp = _round_up(Lq_p, tq)
    n_b = B_p // bt
    n_q = Lq_pp // tq

    qp = jnp.pad(q, ((0, B_p - B), (0, Lq_pp - Lq), (0, Dq_p - Dq)))
    kp = jnp.pad(k, ((0, B_p - B), (0, Lk_p - Lk), (0, Dq_p - Dq)))
    vp = jnp.pad(v, ((0, B_p - B), (0, Lk_p - Lk), (0, Dv_p - Dv)))

    inputs = [qp, kp, vp]
    in_specs = [
        pl.BlockSpec((bt, tq, Dq_p), lambda b, i: (b, i, 0)),
        pl.BlockSpec((bt, Lk_p, Dq_p), lambda b, i: (b, 0, 0)),
        pl.BlockSpec((bt, Lk_p, Dv_p), lambda b, i: (b, 0, 0)),
    ]
    mask_pad_keys = Lk_p > Lk  # padded key columns must not leak into softmax
    if has_mask:
        m = (jnp.asarray(attn_mask) != 0).astype(jnp.float32)
        # pad with 1.0 so padded key columns / rows are masked as well,
        # folding the pad-mask and the user mask into a single jnp.where.
        mp = jnp.pad(m, ((0, B_p - B), (0, Lq_pp - Lq), (0, Lk_p - Lk)),
                     constant_values=1.0)
        inputs.append(mp)
        in_specs.append(pl.BlockSpec((bt, tq, Lk_p), lambda b, i: (b, i, 0)))

    def kernel(*refs):
        if has_mask:
            q_ref, k_ref, v_ref, m_ref, ctx_ref, attn_ref = refs
        else:
            q_ref, k_ref, v_ref, ctx_ref, attn_ref = refs

        # scores: [bt, tq, Lk_p] on the MXU, f32 accumulation
        s = jnp.einsum('bqd,bkd->bqk', q_ref[...], k_ref[...],
                       preferred_element_type=jnp.float32)
        if apply_scale:
            s = s * scale_val
        if has_mask:
            s = jnp.where(m_ref[...] != 0, _NEG_BIG, s)
        elif mask_pad_keys:
            kidx = lax.broadcasted_iota(jnp.int32, s.shape, 2)
            s = jnp.where(kidx < Lk, s, _NEG_BIG)

        # numerically stable softmax over keys (lane axis)
        s_max = jnp.max(s, axis=-1, keepdims=True)
        p = jnp.exp(s - s_max)
        denom = jnp.sum(p, axis=-1, keepdims=True)
        attn = p * pl.reciprocal(denom, approx=False)

        attn_ref[...] = attn
        ctx_ref[...] = jnp.einsum('bqk,bkd->bqd', attn, v_ref[...],
                                  preferred_element_type=jnp.float32)

    cost = pl.CostEstimate(
        flops=2 * B_p * Lq_pp * Lk_p * (Dq_p + Dv_p),
        transcendentals=B_p * Lq_pp * Lk_p,
        bytes_accessed=4 * (int(qp.size) + int(kp.size) + int(vp.size)
                            + B_p * Lq_pp * Lk_p + B_p * Lq_pp * Dv_p),
    )

    ctx_p, attn_p = pl.pallas_call(
        kernel,
        grid=(n_b, n_q),
        in_specs=in_specs,
        out_specs=(
            pl.BlockSpec((bt, tq, Dv_p), lambda b, i: (b, i, 0)),
            pl.BlockSpec((bt, tq, Lk_p), lambda b, i: (b, i, 0)),
        ),
        out_shape=(
            jax.ShapeDtypeStruct((B_p, Lq_pp, Dv_p), jnp.float32),
            jax.ShapeDtypeStruct((B_p, Lq_pp, Lk_p), jnp.float32),
        ),
        compiler_params=pltpu.CompilerParams(
            dimension_semantics=("parallel", "parallel")),
        cost_estimate=cost,
    )(*inputs)

    context = ctx_p[:B, :Lq, :Dv]
    attention = attn_p[:B, :Lq, :Lk]
    return context, attention


def sdpa_reference(q, k, v, scale=None, attn_mask=None):
    """Numpy float64 reference mirroring the PyTorch forward."""
    q = np.asarray(q, np.float64)
    k = np.asarray(k, np.float64)
    v = np.asarray(v, np.float64)
    attn = np.einsum('bqd,bkd->bqk', q, k)
    if scale:
        attn = attn * scale
    if attn_mask is not None:
        attn = np.where(np.asarray(attn_mask, bool), -np.inf, attn)
    attn = attn - attn.max(axis=-1, keepdims=True)
    attn = np.exp(attn)
    attn = attn / attn.sum(axis=-1, keepdims=True)
    ctx = np.einsum('bqk,bkd->bqd', attn, v)
    return ctx, attn


if __name__ == "__main__":
    B, L, D = 2, 8, 32
    key = jax.random.PRNGKey(0)
    kq, kk, kv, km = jax.random.split(key, 4)

    # Round test inputs to the bf16 grid so the correctness check is insensitive
    # to whether the MXU multiplies in bf16 (DEFAULT precision) or full f32.
    def mk(rng, shape):
        x = jax.random.normal(rng, shape, jnp.float32)
        return x.astype(jnp.bfloat16).astype(jnp.float32)

    q = mk(kq, (B, L, D))
    k_ = mk(kk, (B, L, D))
    v = mk(kv, (B, L, D))
    scale = 1.0 / math.sqrt(D)

    # --- unmasked path ---
    ctx, attn = scaled_dot_product_attention(q, k_, v, scale=scale)
    ctx, attn = jax.block_until_ready((ctx, attn))
    ctx_ref, attn_ref = sdpa_reference(q, k_, v, scale=scale)
    np.testing.assert_allclose(np.asarray(attn), attn_ref, rtol=1e-3, atol=1e-3)
    np.testing.assert_allclose(np.asarray(ctx), ctx_ref, rtol=1e-3, atol=1e-3)

    # --- masked path (mask True = forbidden; keep key 0 visible per row) ---
    mask = jax.random.bernoulli(km, 0.3, (B, L, L))
    mask = mask.at[:, :, 0].set(False)
    ctx_m, attn_m = scaled_dot_product_attention(q, k_, v, scale=scale,
                                                 attn_mask=mask)
    ctx_m, attn_m = jax.block_until_ready((ctx_m, attn_m))
    ctx_mr, attn_mr = sdpa_reference(q, k_, v, scale=scale, attn_mask=mask)
    np.testing.assert_allclose(np.asarray(attn_m), attn_mr, rtol=1e-3, atol=1e-3)
    np.testing.assert_allclose(np.asarray(ctx_m), ctx_mr, rtol=1e-3, atol=1e-3)

    print("KERNEL_OK")
</pallas_src>

<mosaic_0001>
module attributes {stable_mosaic.version = 11 : i64} {
  func.func @kernel(%arg0: i32, %arg1: i32, %arg2: memref<1x8x128xf32, #tpu.memory_space<vmem>>, %arg3: memref<1x128x128xf32, #tpu.memory_space<vmem>>, %arg4: memref<1x128x128xf32, #tpu.memory_space<vmem>>, %arg5: memref<1x8x128xf32, #tpu.memory_space<vmem>>, %arg6: memref<1x8x128xf32, #tpu.memory_space<vmem>>) attributes {dimension_semantics = [#tpu.dimension_semantics<parallel>, #tpu.dimension_semantics<parallel>], iteration_bounds = array<i64: 2, 1>, scalar_prefetch = 0 : i64, scratch_operands = 0 : i64, tpu.core_type = #tpu.core_type<tc>, window_params = [{transform_indices = @transform_0, window_bounds = array<i64: 1, 8, 128>}, {transform_indices = @transform_1, window_bounds = array<i64: 1, 128, 128>}, {transform_indices = @transform_2, window_bounds = array<i64: 1, 128, 128>}, {transform_indices = @transform_3, window_bounds = array<i64: 1, 8, 128>}, {transform_indices = @transform_4, window_bounds = array<i64: 1, 8, 128>}]} {
    %c0 = arith.constant 0 : index
    %c0_0 = arith.constant 0 : index
    %c0_1 = arith.constant 0 : index
    %0 = vector.load %arg2[%c0, %c0_0, %c0_1] : memref<1x8x128xf32, #tpu.memory_space<vmem>>, vector<1x8x128xf32>
    %c0_2 = arith.constant 0 : index
    %c0_3 = arith.constant 0 : index
    %c0_4 = arith.constant 0 : index
    %1 = vector.load %arg3[%c0_2, %c0_3, %c0_4] : memref<1x128x128xf32, #tpu.memory_space<vmem>>, vector<1x128x128xf32>
    "tpu.trace_start"() <{level = 10 : i32, message = "bqd,bkd->bqk"}> : () -> ()
    %cst = arith.constant dense<0.000000e+00> : vector<1x8x128xf32>
    %2 = tpu.matmul %0, %1, %cst {dimension_numbers = #tpu.dot_dimension_numbers<[2], [2], [1], [1], [0, 0, 0, 1, 1, 1], [0], [0]>} : vector<1x8x128xf32>, vector<1x128x128xf32>, vector<1x8x128xf32> -> vector<1x8x128xf32>
    "tpu.trace_stop"() : () -> ()
    %cst_5 = arith.constant 0.176776692 : f32
    %3 = vector.broadcast %cst_5 : f32 to vector<1x8x128xf32>
    %4 = arith.mulf %2, %3 : vector<1x8x128xf32>
    %5 = tpu.iota {dimensions = array<i32: 2>} : vector<1x8x128xi32>
    %c8_i32 = arith.constant 8 : i32
    %6 = vector.broadcast %c8_i32 : i32 to vector<1x8x128xi32>
    %7 = arith.cmpi slt, %5, %6 : vector<1x8x128xi32>
    %cst_6 = arith.constant -1.000000e+30 : f32
    %8 = vector.broadcast %cst_6 : f32 to vector<1x8x128xf32>
    %9 = arith.select %7, %4, %8 : vector<1x8x128xi1>, vector<1x8x128xf32>
    %cst_7 = arith.constant dense<0xFF800000> : vector<1x8xf32>
    %10 = vector.multi_reduction <maximumf>, %9, %cst_7 [2] : vector<1x8x128xf32> to vector<1x8xf32>
    %11 = vector.shape_cast %10 : vector<1x8xf32> to vector<1x8x1xf32>
    %12 = vector.broadcast %11 : vector<1x8x1xf32> to vector<1x8x128xf32>
    %13 = arith.subf %9, %12 : vector<1x8x128xf32>
    %14 = math.exp %13 : vector<1x8x128xf32>
    %cst_8 = arith.constant dense<0.000000e+00> : vector<1x8xf32>
    %15 = vector.multi_reduction <add>, %14, %cst_8 [2] : vector<1x8x128xf32> to vector<1x8xf32>
    %16 = vector.shape_cast %15 : vector<1x8xf32> to vector<1x8x1xf32>
    %17 = tpu.reciprocal %16 : vector<1x8x1xf32> -> vector<1x8x1xf32>
    %18 = vector.broadcast %17 : vector<1x8x1xf32> to vector<1x8x128xf32>
    %19 = arith.mulf %14, %18 : vector<1x8x128xf32>
    %c0_9 = arith.constant 0 : index
    %c0_10 = arith.constant 0 : index
    %c0_11 = arith.constant 0 : index
    %20 = vector.load %arg6[%c0_9, %c0_10, %c0_11] : memref<1x8x128xf32, #tpu.memory_space<vmem>>, vector<1x8x128xf32>
    tpu.vector_store %arg6[%c0_9, %c0_10, %c0_11], %19 {strides = array<i32>} : memref<1x8x128xf32, #tpu.memory_space<vmem>>, vector<1x8x128xf32>,
    %c0_12 = arith.constant 0 : index
    %c0_13 = arith.constant 0 : index
    %c0_14 = arith.constant 0 : index
    %21 = vector.load %arg4[%c0_12, %c0_13, %c0_14] : memref<1x128x128xf32, #tpu.memory_space<vmem>>, vector<1x128x128xf32>
    "tpu.trace_start"() <{level = 10 : i32, message = "bqk,bkd->bqd"}> : () -> ()
    %cst_15 = arith.constant dense<0.000000e+00> : vector<1x8x128xf32>
    %22 = tpu.matmul %19, %21, %cst_15 {dimension_numbers = #tpu.dot_dimension_numbers<[2], [1], [1], [2], [0, 0, 0, 1, 1, 2], [0], [0]>} : vector<1x8x128xf32>, vector<1x128x128xf32>, vector<1x8x128xf32> -> vector<1x8x128xf32>
    "tpu.trace_stop"() : () -> ()
    %c0_16 = arith.constant 0 : index
    %c0_17 = arith.constant 0 : index
    %c0_18 = arith.constant 0 : index
    %23 = vector.load %arg5[%c0_16, %c0_17, %c0_18] : memref<1x8x128xf32, #tpu.memory_space<vmem>>, vector<1x8x128xf32>
    tpu.vector_store %arg5[%c0_16, %c0_17, %c0_18], %22 {strides = array<i32>} : memref<1x8x128xf32, #tpu.memory_space<vmem>>, vector<1x8x128xf32>,
    return
  }
  func.func @transform_0(%arg0: i32, %arg1: i32) -> (i32, i32, i32) {
    %c0_i32 = arith.constant 0 : i32
    %c0_i32_0 = arith.constant 0 : i32
    return %arg0, %arg1, %c0_i32 : i32, i32, i32
  }
  func.func @transform_1(%arg0: i32, %arg1: i32) -> (i32, i32, i32) {
    %c0_i32 = arith.constant 0 : i32
    %c0_i32_0 = arith.constant 0 : i32
    %c0_i32_1 = arith.constant 0 : i32
    return %arg0, %c0_i32, %c0_i32_0 : i32, i32, i32
  }
  func.func @transform_2(%arg0: i32, %arg1: i32) -> (i32, i32, i32) {
    %c0_i32 = arith.constant 0 : i32
    %c0_i32_0 = arith.constant 0 : i32
    %c0_i32_1 = arith.constant 0 : i32
    return %arg0, %c0_i32, %c0_i32_0 : i32, i32, i32
  }
  func.func @transform_3(%arg0: i32, %arg1: i32) -> (i32, i32, i32) {
    %c0_i32 = arith.constant 0 : i32
    %c0_i32_0 = arith.constant 0 : i32
    return %arg0, %arg1, %c0_i32 : i32, i32, i32
  }
  func.func @transform_4(%arg0: i32, %arg1: i32) -> (i32, i32, i32) {
    %c0_i32 = arith.constant 0 : i32
    %c0_i32_0 = arith.constant 0 : i32
    return %arg0, %arg1, %c0_i32 : i32, i32, i32
  }
}

</mosaic_0001>

<llo_original>
// kernel: tpu_custom_call.1
$region0: #{tpu_custom_call.1}
  #allocation0 [shape = 'u32[]', space=smem, size = 0x4, offset = 0x4, fixed_abs, tag = 'smem constant byte address 0x4 - core index']
  #allocation1 [shape = 'u32[144,128]{1,0:T(1,128)}', space=vmem, size = 0x12000, scoped, tag = 'internal scratch']
  %s0 = inlined_call_operand.hbm [shape: f32[2,8,128], index: 0, kind: input, shape index: {}]
  %s1 = inlined_call_operand.hbm [shape: f32[2,128,128], index: 1, kind: input, shape index: {}]
  %s2 = inlined_call_operand.hbm [shape: f32[2,128,128], index: 2, kind: input, shape index: {}]
  %s3 = inlined_call_operand.hbm [shape: f32[2,8,128], index: 3, kind: output, shape index: {0}]
  %s4 = inlined_call_operand.hbm [shape: f32[2,8,128], index: 4, kind: output, shape index: {1}]
  %5 = xla_tuple %s3, %s4
  %s6 = sld [smem:[#allocation0]]
  $region65: #{tpu_custom_call.1} parent=0
    _
  %s8 = ssub.s32 1, %s6
  %s9 = scalar_select 0, %s8, %s6
  $region1: #{tpu_custom_call.1} parent=0
    #allocation2 [shape = 'u8[8192]{0}', space=vmem, size = 0x2000, scoped, tag = 'input window, operand 0']
    #allocation3 [shape = 's32[2]{0}', space=sflag, size = 0x8, scoped, tag = 'scoped memory for tpu_custom_call.1']
    #allocation4 [shape = 's32[2]{0}', space=sflag, size = 0x8, scoped, tag = 'scoped memory for tpu_custom_call.1']
    #allocation5 [shape = 'u8[131072]{0}', space=vmem, size = 0x20000, scoped, tag = 'input window, operand 1']
    #allocation6 [shape = 's32[2]{0}', space=sflag, size = 0x8, scoped, tag = 'scoped memory for tpu_custom_call.1']
    #allocation7 [shape = 'u8[131072]{0}', space=vmem, size = 0x20000, scoped, tag = 'input window, operand 2']
    #allocation8 [shape = 'u8[8192]{0}', space=vmem, size = 0x2000, scoped, tag = 'output window, operand 0']
    #allocation9 [shape = 'u8[8192]{0}', space=vmem, size = 0x2000, scoped, tag = 'output window, operand 1']
    #allocation10 [shape = 's32[2]{0}', space=sflag, size = 0x8, scoped, tag = 'scoped memory for tpu_custom_call.1']
    %10 = vsyncpa [#allocation3], 0
    %s11 = scalar_lea.sflag [#allocation3], 1
    %12 = vsyncpa %s11, 0
    %13 = vsyncpa [#allocation6], 0
    %s14 = scalar_lea.sflag [#allocation6], 1
    %15 = vsyncpa %s14, 0
    %16 = vsyncpa [#allocation4], 0
    %s17 = scalar_lea.sflag [#allocation4], 1
    %18 = vsyncpa %s17, 0
    %19 = vsyncpa [#allocation10], 0
    %s20 = scalar_lea.sflag [#allocation10], 1
    %21 = vsyncpa %s20, 0
    loop: start=0, step=1, limit=4
    $region2: #{tpu_custom_call.1} parent=1 // loop_pre_header
      _
    $region3: #{tpu_custom_call.1} parent=1 // loop_header
      %s23 = sphi 0, %s27
      %p24 = scmp.ge.s32.totalorder %s23, 4
      %s30 = sphi 0, %s42
      %s31 = sphi 0, %s38
      %s32 = sphi 0, %s30
      %s33 = sphi 0, %s31
      %s34 = sphi 0, %s32
      %s35 = sphi 0, %s33
      %s47 = sphi 0, %s49
      %s50 = sphi 0, %s47
      %s51 = sphi 0, %s50
      %s67 = sphi 0, %s51
      %s73 = sphi 0, %s75
      %s76 = sphi 0, %s73
      %s77 = sphi 0, %s76
      %s93 = sphi 0, %s77
      %s99 = sphi 0, %s101
      %s102 = sphi 0, %s99
      %s103 = sphi 0, %s102
      %s119 = sphi 0, %s103
      %s127 = sphi 0, %s129
      %s130 = sphi 0, %s127
      %s131 = sphi 0, %s130
      %s147 = sphi 0, %s131
      %s155 = sphi 0, %s157
      %s158 = sphi 0, %s155
      %s159 = sphi 0, %s158
      %s175 = sphi 0, %s159
    $region4: #{tpu_custom_call.1} parent=1 // loop_header_branch
      %26 = sbr.rel (%p24) target = $region8
    $region5: #{tpu_custom_call.1} parent=1 // loop_body
      %s28 = ssub.s32 %s23, 1
      %s29 = ssub.s32 %s23, 2
      %s36 = sadd.s32 1, %s31
      %p37 = scmp.ge.s32.totalorder %s36, 1
      %s38 = scalar_select %p37, 0, %s36
      %s39 = sadd.s32 1, %s30
      %s40 = scalar_select %p37, %s39, %s30
      %p41 = scmp.ge.s32.totalorder %s40, 2
      %s42 = scalar_select %p41, 0, %s40
      %s43 = ssub.s32 %s30, %s42
      %s44 = ssub.s32 %s31, %s38
      %s45 = sor.u32 %s43, %s44
      %p46 = scmp.eq.s32.totalorder %s45, 0
      %s48 = sadd.s32 %s47, 1
      %s49 = scalar_select %p46, %s47, %s48
      %p52 = pneg %p46
      %p53 = scmp.eq.s32.totalorder %s23, 1
      %p54 = por %p52, %p53
      %p55 = scmp.ne.s32.totalorder %s47, %s50
      %p56 = scmp.eq.s32.totalorder %s23, 0
      %p57 = por %p55, %p56
      %p58 = scmp.ne.s32.totalorder %s47, %s50
      %p59 = scmp.eq.s32.totalorder %s28, 1
      %p60 = por %p58, %p59
      %p61 = scmp.ne.s32.totalorder %s50, %s51
      %p62 = scmp.eq.s32.totalorder %s28, 0
      %p63 = por %p61, %p62
      %p64 = scmp.ne.s32.totalorder %s50, %s51
      %p65 = scmp.eq.s32.totalorder %s29, 1
      %p66 = por %p64, %p65
      %p68 = scmp.ne.s32.totalorder %s51, %s67
      %p69 = scmp.eq.s32.totalorder %s29, 0
      %p70 = por %p68, %p69
      %s71 = ssub.s32 %s30, %s42
      %p72 = scmp.eq.s32.totalorder %s71, 0
      %s74 = sadd.s32 %s73, 1
      %s75 = scalar_select %p72, %s73, %s74
      %p78 = pneg %p72
      %p79 = scmp.eq.s32.totalorder %s23, 1
      %p80 = por %p78, %p79
      %p81 = scmp.ne.s32.totalorder %s73, %s76
      %p82 = scmp.eq.s32.totalorder %s23, 0
      %p83 = por %p81, %p82
      %p84 = scmp.ne.s32.totalorder %s73, %s76
      %p85 = scmp.eq.s32.totalorder %s28, 1
      %p86 = por %p84, %p85
      %p87 = scmp.ne.s32.totalorder %s76, %s77
      %p88 = scmp.eq.s32.totalorder %s28, 0
      %p89 = por %p87, %p88
      %p90 = scmp.ne.s32.totalorder %s76, %s77
      %p91 = scmp.eq.s32.totalorder %s29, 1
      %p92 = por %p90, %p91
      %p94 = scmp.ne.s32.totalorder %s77, %s93
      %p95 = scmp.eq.s32.totalorder %s29, 0
      %p96 = por %p94, %p95
      %s97 = ssub.s32 %s30, %s42
      %p98 = scmp.eq.s32.totalorder %s97, 0
      %s100 = sadd.s32 %s99, 1
      %s101 = scalar_select %p98, %s99, %s100
      %p104 = pneg %p98
      %p105 = scmp.eq.s32.totalorder %s23, 1
      %p106 = por %p104, %p105
      %p107 = scmp.ne.s32.totalorder %s99, %s102
      %p108 = scmp.eq.s32.totalorder %s23, 0
      %p109 = por %p107, %p108
      %p110 = scmp.ne.s32.totalorder %s99, %s102
      %p111 = scmp.eq.s32.totalorder %s28, 1
      %p112 = por %p110, %p111
      %p113 = scmp.ne.s32.totalorder %s102, %s103
      %p114 = scmp.eq.s32.totalorder %s28, 0
      %p115 = por %p113, %p114
      %p116 = scmp.ne.s32.totalorder %s102, %s103
      %p117 = scmp.eq.s32.totalorder %s29, 1
      %p118 = por %p116, %p117
      %p120 = scmp.ne.s32.totalorder %s103, %s119
      %p121 = scmp.eq.s32.totalorder %s29, 0
      %p122 = por %p120, %p121
      %s123 = ssub.s32 %s30, %s42
      %s124 = ssub.s32 %s31, %s38
      %s125 = sor.u32 %s123, %s124
      %p126 = scmp.eq.s32.totalorder %s125, 0
      %s128 = sadd.s32 %s127, 1
      %s129 = scalar_select %p126, %s127, %s128
      %p132 = pneg %p126
      %p133 = scmp.eq.s32.totalorder %s23, 1
      %p134 = por %p132, %p133
      %p135 = scmp.ne.s32.totalorder %s127, %s130
      %p136 = scmp.eq.s32.totalorder %s23, 0
      %p137 = por %p135, %p136
      %p138 = scmp.ne.s32.totalorder %s127, %s130
      %p139 = scmp.eq.s32.totalorder %s28, 1
      %p140 = por %p138, %p139
      %p141 = scmp.ne.s32.totalorder %s130, %s131
      %p142 = scmp.eq.s32.totalorder %s28, 0
      %p143 = por %p141, %p142
      %p144 = scmp.ne.s32.totalorder %s130, %s131
      %p145 = scmp.eq.s32.totalorder %s29, 1
      %p146 = por %p144, %p145
      %p148 = scmp.ne.s32.totalorder %s131, %s147
      %p149 = scmp.eq.s32.totalorder %s29, 0
      %p150 = por %p148, %p149
      %s151 = ssub.s32 %s30, %s42
      %s152 = ssub.s32 %s31, %s38
      %s153 = sor.u32 %s151, %s152
      %p154 = scmp.eq.s32.totalorder %s153, 0
      %s156 = sadd.s32 %s155, 1
      %s157 = scalar_select %p154, %s155, %s156
      %p160 = pneg %p154
      %p161 = scmp.eq.s32.totalorder %s23, 1
      %p162 = por %p160, %p161
      %p163 = scmp.ne.s32.totalorder %s155, %s158
      %p164 = scmp.eq.s32.totalorder %s23, 0
      %p165 = por %p163, %p164
      %p166 = scmp.ne.s32.totalorder %s155, %s158
      %p167 = scmp.eq.s32.totalorder %s28, 1
      %p168 = por %p166, %p167
      %p169 = scmp.ne.s32.totalorder %s158, %s159
      %p170 = scmp.eq.s32.totalorder %s28, 0
      %p171 = por %p169, %p170
      %p172 = scmp.ne.s32.totalorder %s158, %s159
      %p173 = scmp.eq.s32.totalorder %s29, 1
      %p174 = por %p172, %p173
      %p176 = scmp.ne.s32.totalorder %s159, %s175
      %p177 = scmp.eq.s32.totalorder %s29, 0
      %p178 = por %p176, %p177
      %p179 = scmp.le.s32.totalorder 1, %s23
      %p180 = scmp.lt.s32.totalorder %s23, 3
      %p181 = pnand %p179, %p180
      %p182 = pneg %p181
      // Predicated region
      $region9: #{tpu_custom_call.1} parent=5 // pred_check
        _
      $region10: #{tpu_custom_call.1} parent=5 // pred_check_branch
        %184 = sbr.rel (%p181) target = $region12
      $region11: #{tpu_custom_call.1} parent=5 // pred_region
        %s185 = ssub.s32 %s23, 1
      $region12: #{tpu_custom_call.1} parent=5 // pred_fallthru
        _
      %p186 = scmp.lt.s32.totalorder %s23, 2
      // Predicated region
      $region13: #{tpu_custom_call.1} parent=5 // pred_check
        %p187 = pneg %p186
      $region14: #{tpu_custom_call.1} parent=5 // pred_check_branch
        %189 = sbr.rel (%p187) target = $region16
      $region15: #{tpu_custom_call.1} parent=5 // pred_region
        // Predicated region
        $region17: #{tpu_custom_call.1} parent=15 // pred_check
          %p190 = pneg %p57
        $region18: #{tpu_custom_call.1} parent=15 // pred_check_branch
          %192 = sbr.rel (%p190) target = $region20
        $region19: #{tpu_custom_call.1} parent=15 // pred_region
          %s193 = sand.u32 %s47, 1
          %s194 = scalar_lea.sflag [#allocation3], %s193
          %s195 = sand.u32 %s47, 1
          %s196 = smul.addr %s195, 8
          %s197 = scalar_lea.vmem [#allocation2], %s196
          %s199 = ssub.s32 128, 128
          %200 = vsyncadd %s194, %s199
          %s201 = sadd.s32 %s31, %s30
          %s202 = smul.addr %s201, 128
          %s203 = scalar_lea.hbm %s0, %s202
          %s205 = sshll.u32 %s197, 4
          %s206 = int_to_ptr.vmem [resolvable:$true] %s205
          %208 = dma.hbm_to_vmem [thread:$0]  %s203, 128, %s206, %s194
        $region20: #{tpu_custom_call.1} parent=15 // pred_fallthru
          _
        // Predicated region
        $region21: #{tpu_custom_call.1} parent=15 // pred_check
          %p209 = pneg %p83
        $region22: #{tpu_custom_call.1} parent=15 // pred_check_branch
          %211 = sbr.rel (%p209) target = $region24
        $region23: #{tpu_custom_call.1} parent=15 // pred_region
          %s212 = sand.u32 %s23, 1
          %s213 = scalar_lea.sflag [#allocation6], %s212
          %s214 = sand.u32 %s73, 1
          %s215 = smul.addr %s214, 128
          %s216 = scalar_lea.vmem [#allocation5], %s215
          %s218 = ssub.s32 2048, 2048
          %219 = vsyncadd %s213, %s218
          %s220 = smul.addr %s30, 16
          %s221 = smul.addr %s220, 128
          %s222 = scalar_lea.hbm %s1, %s221
          %s223 = sshll.u32 %s216, 4
          %s224 = int_to_ptr.vmem [resolvable:$true] %s223
          %229 = dma.hbm_to_vmem [thread:$0]  %s222, 2048, %s224, %s213, 128, 128, 8
        $region24: #{tpu_custom_call.1} parent=15 // pred_fallthru
          _
        // Predicated region
        $region25: #{tpu_custom_call.1} parent=15 // pred_check
          %p230 = pneg %p109
        $region26: #{tpu_custom_call.1} parent=15 // pred_check_branch
          %232 = sbr.rel (%p230) target = $region28
        $region27: #{tpu_custom_call.1} parent=15 // pred_region
          %s233 = sand.u32 %s23, 1
          %s234 = scalar_lea.sflag [#allocation6], %s233
          %s235 = sand.u32 %s99, 1
          %s236 = smul.addr %s235, 128
          %s237 = scalar_lea.vmem [#allocation7], %s236
          %s239 = ssub.s32 2048, 2048
          %240 = vsyncadd %s234, %s239
          %s241 = smul.addr %s30, 16
          %s242 = smul.addr %s241, 128
          %s243 = scalar_lea.hbm %s2, %s242
          %s244 = sshll.u32 %s237, 4
          %s245 = int_to_ptr.vmem [resolvable:$true] %s244
          %250 = dma.hbm_to_vmem [thread:$0]  %s243, 2048, %s245, %s234, 128, 128, 8
        $region28: #{tpu_custom_call.1} parent=15 // pred_fallthru
          _
      $region16: #{tpu_custom_call.1} parent=5 // pred_fallthru
        _
      %p251 = scmp.le.s32.totalorder 1, %s23
      %p252 = scmp.lt.s32.totalorder %s23, 3
      %p253 = pnand %p251, %p252
      %p254 = pneg %p253
      // Predicated region
      $region29: #{tpu_custom_call.1} parent=5 // pred_check
        _
      $region30: #{tpu_custom_call.1} parent=5 // pred_check_branch
        %256 = sbr.rel (%p253) target = $region32
      $region31: #{tpu_custom_call.1} parent=5 // pred_region
        %s257 = ssub.s32 %s23, 1
        %s258 = sand.u32 %s50, 1
        %s259 = scalar_lea.sflag [#allocation3], %s258
        %s260 = sand.u32 %s50, 1
        %s261 = smul.addr %s260, 8
        %s262 = scalar_lea.vmem [#allocation2], %s261
        // Predicated region
        $region33: #{tpu_custom_call.1} parent=31 // pred_check
          %p263 = pneg %p63
        $region34: #{tpu_custom_call.1} parent=31 // pred_check_branch
          %265 = sbr.rel (%p263) target = $region36
        $region35: #{tpu_custom_call.1} parent=31 // pred_region
          %266 = dma.done %s259, 128
        $region36: #{tpu_custom_call.1} parent=31 // pred_fallthru
          _
        %s267 = sand.u32 %s28, 1
        %s268 = scalar_lea.sflag [#allocation6], %s267
        %s269 = sand.u32 %s76, 1
        %s270 = smul.addr %s269, 128
        %s271 = scalar_lea.vmem [#allocation5], %s270
        // Predicated region
        $region37: #{tpu_custom_call.1} parent=31 // pred_check
          %p272 = pneg %p89
        $region38: #{tpu_custom_call.1} parent=31 // pred_check_branch
          %274 = sbr.rel (%p272) target = $region40
        $region39: #{tpu_custom_call.1} parent=31 // pred_region
          %275 = dma.done %s268, 2048
        $region40: #{tpu_custom_call.1} parent=31 // pred_fallthru
          _
        %s276 = sand.u32 %s28, 1
        %s277 = scalar_lea.sflag [#allocation6], %s276
        %s278 = sand.u32 %s102, 1
        %s279 = smul.addr %s278, 128
        %s280 = scalar_lea.vmem [#allocation7], %s279
        // Predicated region
        $region41: #{tpu_custom_call.1} parent=31 // pred_check
          %p281 = pneg %p115
        $region42: #{tpu_custom_call.1} parent=31 // pred_check_branch
          %283 = sbr.rel (%p281) target = $region44
        $region43: #{tpu_custom_call.1} parent=31 // pred_region
          %284 = dma.done %s277, 2048
        $region44: #{tpu_custom_call.1} parent=31 // pred_fallthru
          _
        %s285 = sand.u32 %s50, 1
        %s286 = scalar_lea.sflag [#allocation3], %s285
        %s287 = sand.u32 %s50, 1
        %s288 = smul.addr %s287, 8
        %s289 = scalar_lea.vmem [#allocation2], %s288
        %p290 = pneg %p63
        %p291 = pneg %p60
        %s292 = sand.u32 %s28, 1
        %s293 = scalar_lea.sflag [#allocation6], %s292
        %s294 = sand.u32 %s76, 1
        %s295 = smul.addr %s294, 128
        %s296 = scalar_lea.vmem [#allocation5], %s295
        %p297 = pneg %p89
        %p298 = pneg %p86
        %s299 = sand.u32 %s28, 1
        %s300 = scalar_lea.sflag [#allocation6], %s299
        %s301 = sand.u32 %s102, 1
        %s302 = smul.addr %s301, 128
        %s303 = scalar_lea.vmem [#allocation7], %s302
        %p304 = pneg %p115
        %p305 = pneg %p112
        %p306 = pneg %p143
        %p307 = pneg %p140
        %s308 = sand.u32 %s130, 1
        %s309 = scalar_lea.sflag [#allocation4], %s308
        %s310 = sand.u32 %s130, 1
        %s311 = smul.addr %s310, 8
        %s312 = scalar_lea.vmem [#allocation8], %s311
        %p313 = pneg %p171
        %p314 = pneg %p168
        %s315 = sand.u32 %s158, 1
        %s316 = scalar_lea.sflag [#allocation10], %s315
        %s317 = sand.u32 %s158, 1
        %s318 = smul.addr %s317, 8
        %s319 = scalar_lea.vmem [#allocation9], %s318
        %v320 = vld [vmem:[%s262] sm:$0xff]
        %v321 = vld [vmem:[%s271] sm:$0xff]
        %v322 = vld [vmem:[%s271 + $0x8] sm:$0xff]
        %v323 = vld [vmem:[%s271 + $0x10] sm:$0xff]
        %v324 = vld [vmem:[%s271 + $0x18] sm:$0xff]
        %v325 = vld [vmem:[%s271 + $0x20] sm:$0xff]
        %v326 = vld [vmem:[%s271 + $0x28] sm:$0xff]
        %v327 = vld [vmem:[%s271 + $0x30] sm:$0xff]
        %v328 = vld [vmem:[%s271 + $0x38] sm:$0xff]
        %v329 = vld [vmem:[%s271 + $0x40] sm:$0xff]
        %v330 = vld [vmem:[%s271 + $0x48] sm:$0xff]
        %v331 = vld [vmem:[%s271 + $0x50] sm:$0xff]
        %v332 = vld [vmem:[%s271 + $0x58] sm:$0xff]
        %v333 = vld [vmem:[%s271 + $0x60] sm:$0xff]
        %v334 = vld [vmem:[%s271 + $0x68] sm:$0xff]
        %v335 = vld [vmem:[%s271 + $0x70] sm:$0xff]
        %v336 = vld [vmem:[%s271 + $0x78] sm:$0xff]
        %337 = vmatprep.subr.mxu0 0.0
        %338 = vmatpush1.xpose.msra.mxu0 %v321
        %339 = vmatprep.subr.mxu0 0.0
        %340 = vmatpush1.xpose.msra.mxu0 %v322
        %341 = vmatprep.subr.mxu0 0.0
        %342 = vmatpush1.xpose.msra.mxu0 %v323
        %343 = vmatprep.subr.mxu0 0.0
        %344 = vmatpush1.xpose.msra.mxu0 %v324
        %345 = vmatprep.subr.mxu0 0.0
        %346 = vmatpush1.xpose.msra.mxu0 %v325
        %347 = vmatprep.subr.mxu0 0.0
        %348 = vmatpush1.xpose.msra.mxu0 %v326
        %349 = vmatprep.subr.mxu0 0.0
        %350 = vmatpush1.xpose.msra.mxu0 %v327
        %351 = vmatprep.subr.mxu0 0.0
        %352 = vmatpush1.xpose.msra.mxu0 %v328
        %353 = vmatprep.subr.mxu0 0.0
        %354 = vmatpush1.xpose.msra.mxu0 %v329
        %355 = vmatprep.subr.mxu0 0.0
        %356 = vmatpush1.xpose.msra.mxu0 %v330
        %357 = vmatprep.subr.mxu0 0.0
        %358 = vmatpush1.xpose.msra.mxu0 %v331
        %359 = vmatprep.subr.mxu0 0.0
        %360 = vmatpush1.xpose.msra.mxu0 %v332
        %361 = vmatprep.subr.mxu0 0.0
        %362 = vmatpush1.xpose.msra.mxu0 %v333
        %363 = vmatprep.subr.mxu0 0.0
        %364 = vmatpush1.xpose.msra.mxu0 %v334
        %365 = vmatprep.subr.mxu0 0.0
        %366 = vmatpush1.xpose.msra.mxu0 %v335
        %367 = vmatprep.subr.mxu0 0.0
        %368 = vmatpush1.xpose.msra.mxu0 %v336
        %369 = vmatprep.subr.mxu0 0.0
        %370 = vmatpush1.xpose.msra.mxu0 0.0
        %371 = vmatprep.subr.mxu0 0.0
        %372 = vmatpush1.xpose.msra.mxu0 0.0
        %373 = vmatprep.subr.mxu0 0.0
        %374 = vmatpush1.xpose.msra.mxu0 0.0
        %375 = vmatprep.subr.mxu0 0.0
        %376 = vmatpush1.xpose.msra.mxu0 0.0
        %377 = vmatprep.subr.mxu0 0.0
        %378 = vmatpush1.xpose.msra.mxu0 0.0
        %379 = vmatprep.subr.mxu0 0.0
        %380 = vmatpush1.xpose.msra.mxu0 0.0
        %381 = vmatprep.subr.mxu0 0.0
        %382 = vmatpush1.xpose.msra.mxu0 0.0
        %383 = vmatprep.subr.mxu0 0.0
        %384 = vmatpush1.xpose.msra.mxu0 0.0
        %385 = vmatprep.subr.mxu0 0.0
        %386 = vmatpush1.xpose.msra.mxu0 0.0
        %387 = vmatprep.subr.mxu0 0.0
        %388 = vmatpush1.xpose.msra.mxu0 0.0
        %389 = vmatprep.subr.mxu0 0.0
        %390 = vmatpush1.xpose.msra.mxu0 0.0
        %391 = vmatprep.subr.mxu0 0.0
        %392 = vmatpush1.xpose.msra.mxu0 0.0
        %393 = vmatprep.subr.mxu0 0.0
        %394 = vmatpush1.xpose.msra.mxu0 0.0
        %395 = vmatprep.subr.mxu0 0.0
        %396 = vmatpush1.xpose.msra.mxu0 0.0
        %397 = vmatprep.subr.mxu0 0.0
        %398 = vmatpush1.xpose.msra.mxu0 0.0
        %399 = vmatprep.subr.mxu0 0.0
        %400 = vmatpush1.xpose.msra.mxu0 0.0
        %401 = vmatprep.mubr.f32.mxu0 0.0
        %402 = vmatmul.mubr.f32.gmra.mrb[0].mxu0 %v320
        %v403 = vpop.f32.mrb[0].mxu0
        %v404 = vadd.f32 0.0, %v403
        %v405 = vpop.f32.mrb[0].mxu0
        %406 = vdwg.mxu0
        %v407 = vmul.f32 %v404, 0.17677669
        %v408 = vlaneseq
        %v409 = vand.u32 %v408, 127
        %vm410 = vcmp.lt.s32.totalorder %v409, 8
        %v411 = vsel %vm410, %v407, -1e+30
        %412 = vmax.xlane.f32.xlu0 %v411
        %v413 = vpop.xlane.xlu0 %412
        %v414 = vsub.f32 %v411, %v413
        %v415 = vmul.f32 %v414, 1.442695
        %v416 = vpow.pop %v415
        %417 = vadd.xlane.f32.xlu0 %v416
        %v418 = vpop.xlane.xlu0 %417
        %v419 = vrcp.pop %v418
        %v420 = vmul.f32 %v416, %v419
        %421 = vst [vmem:[%s319] sm:$0xff] %v420
        %v422 = vld [vmem:[%s280] sm:$0xff]
        %v423 = vld [vmem:[%s280 + $0x8] sm:$0xff]
        %v424 = vld [vmem:[%s280 + $0x10] sm:$0xff]
        %v425 = vld [vmem:[%s280 + $0x18] sm:$0xff]
        %v426 = vld [vmem:[%s280 + $0x20] sm:$0xff]
        %v427 = vld [vmem:[%s280 + $0x28] sm:$0xff]
        %v428 = vld [vmem:[%s280 + $0x30] sm:$0xff]
        %v429 = vld [vmem:[%s280 + $0x38] sm:$0xff]
        %v430 = vld [vmem:[%s280 + $0x40] sm:$0xff]
        %v431 = vld [vmem:[%s280 + $0x48] sm:$0xff]
        %v432 = vld [vmem:[%s280 + $0x50] sm:$0xff]
        %v433 = vld [vmem:[%s280 + $0x58] sm:$0xff]
        %v434 = vld [vmem:[%s280 + $0x60] sm:$0xff]
        %v435 = vld [vmem:[%s280 + $0x68] sm:$0xff]
        %v436 = vld [vmem:[%s280 + $0x70] sm:$0xff]
        %v437 = vld [vmem:[%s280 + $0x78] sm:$0xff]
        %438 = vmatprep.subr.mxu0 0.0
        %439 = vmatpush1.msra.mxu0 %v422
        %440 = vmatprep.subr.mxu0 0.0
        %441 = vmatpush1.msra.mxu0 %v423
        %442 = vmatprep.subr.mxu0 0.0
        %443 = vmatpush1.msra.mxu0 %v424
        %444 = vmatprep.subr.mxu0 0.0
        %445 = vmatpush1.msra.mxu0 %v425
        %446 = vmatprep.subr.mxu0 0.0
        %447 = vmatpush1.msra.mxu0 %v426
        %448 = vmatprep.subr.mxu0 0.0
        %449 = vmatpush1.msra.mxu0 %v427
        %450 = vmatprep.subr.mxu0 0.0
        %451 = vmatpush1.msra.mxu0 %v428
        %452 = vmatprep.subr.mxu0 0.0
        %453 = vmatpush1.msra.mxu0 %v429
        %454 = vmatprep.subr.mxu0 0.0
        %455 = vmatpush1.msra.mxu0 %v430
        %456 = vmatprep.subr.mxu0 0.0
        %457 = vmatpush1.msra.mxu0 %v431
        %458 = vmatprep.subr.mxu0 0.0
        %459 = vmatpush1.msra.mxu0 %v432
        %460 = vmatprep.subr.mxu0 0.0
        %461 = vmatpush1.msra.mxu0 %v433
        %462 = vmatprep.subr.mxu0 0.0
        %463 = vmatpush1.msra.mxu0 %v434
        %464 = vmatprep.subr.mxu0 0.0
        %465 = vmatpush1.msra.mxu0 %v435
        %466 = vmatprep.subr.mxu0 0.0
        %467 = vmatpush1.msra.mxu0 %v436
        %468 = vmatprep.subr.mxu0 0.0
        %469 = vmatpush1.msra.mxu0 %v437
        %470 = vmatprep.subr.mxu0 0.0
        %471 = vmatpush1.msra.mxu0 0.0
        %472 = vmatprep.subr.mxu0 0.0
        %473 = vmatpush1.msra.mxu0 0.0
        %474 = vmatprep.subr.mxu0 0.0
        %475 = vmatpush1.msra.mxu0 0.0
        %476 = vmatprep.subr.mxu0 0.0
        %477 = vmatpush1.msra.mxu0 0.0
        %478 = vmatprep.subr.mxu0 0.0
        %479 = vmatpush1.msra.mxu0 0.0
        %480 = vmatprep.subr.mxu0 0.0
        %481 = vmatpush1.msra.mxu0 0.0
        %482 = vmatprep.subr.mxu0 0.0
        %483 = vmatpush1.msra.mxu0 0.0
        %484 = vmatprep.subr.mxu0 0.0
        %485 = vmatpush1.msra.mxu0 0.0
        %486 = vmatprep.subr.mxu0 0.0
        %487 = vmatpush1.msra.mxu0 0.0
        %488 = vmatprep.subr.mxu0 0.0
        %489 = vmatpush1.msra.mxu0 0.0
        %490 = vmatprep.subr.mxu0 0.0
        %491 = vmatpush1.msra.mxu0 0.0
        %492 = vmatprep.subr.mxu0 0.0
        %493 = vmatpush1.msra.mxu0 0.0
        %494 = vmatprep.subr.mxu0 0.0
        %495 = vmatpush1.msra.mxu0 0.0
        %496 = vmatprep.subr.mxu0 0.0
        %497 = vmatpush1.msra.mxu0 0.0
        %498 = vmatprep.subr.mxu0 0.0
        %499 = vmatpush1.msra.mxu0 0.0
        %500 = vmatprep.subr.mxu0 0.0
        %501 = vmatpush1.msra.mxu0 0.0
        %502 = vmatprep.mubr.f32.mxu0 0.0
        %503 = vmatmul.mubr.f32.gmra.mrb[0].mxu0 %v420
        %v504 = vpop.f32.mrb[0].mxu0
        %v505 = vadd.f32 0.0, %v504
        %v506 = vpop.f32.mrb[0].mxu0
        %507 = vdwg.mxu0
        %508 = vst [vmem:[%s312] sm:$0xff] %v505
        %s509 = sand.u32 %s130, 1
        %s510 = scalar_lea.sflag [#allocation4], %s509
        %s511 = sand.u32 %s130, 1
        %s512 = smul.addr %s511, 8
        %s513 = scalar_lea.vmem [#allocation8], %s512
        %s514 = sand.u32 %s158, 1
        %s515 = scalar_lea.sflag [#allocation10], %s514
        %s516 = sand.u32 %s158, 1
        %s517 = smul.addr %s516, 8
        %s518 = scalar_lea.vmem [#allocation9], %s517
        // Predicated region
        $region45: #{tpu_custom_call.1} parent=31 // pred_check
          %p519 = pneg %p140
        $region46: #{tpu_custom_call.1} parent=31 // pred_check_branch
          %521 = sbr.rel (%p519) target = $region48
        $region47: #{tpu_custom_call.1} parent=31 // pred_region
          %s523 = ssub.s32 128, 128
          %524 = vsyncadd %s510, %s523
          %s525 = sadd.s32 %s33, %s32
          %s526 = smul.addr %s525, 128
          %s527 = scalar_lea.hbm %s3, %s526
          %s529 = sshll.u32 %s513, 4
          %s530 = int_to_ptr.vmem [resolvable:$true] %s529
          %532 = dma.vmem_to_hbm [thread:$0]  %s530, 128, %s527, %s510
        $region48: #{tpu_custom_call.1} parent=31 // pred_fallthru
          _
        // Predicated region
        $region49: #{tpu_custom_call.1} parent=31 // pred_check
          %p533 = pneg %p168
        $region50: #{tpu_custom_call.1} parent=31 // pred_check_branch
          %535 = sbr.rel (%p533) target = $region52
        $region51: #{tpu_custom_call.1} parent=31 // pred_region
          %s537 = ssub.s32 128, 128
          %538 = vsyncadd %s515, %s537
          %s539 = sadd.s32 %s33, %s32
          %s540 = smul.addr %s539, 128
          %s541 = scalar_lea.hbm %s4, %s540
          %s543 = sshll.u32 %s518, 4
          %s544 = int_to_ptr.vmem [resolvable:$true] %s543
          %546 = dma.vmem_to_hbm [thread:$0]  %s544, 128, %s541, %s515
        $region52: #{tpu_custom_call.1} parent=31 // pred_fallthru
          _
      $region32: #{tpu_custom_call.1} parent=5 // pred_fallthru
        _
      %p547 = scmp.le.s32.totalorder 2, %s23
      // Predicated region
      $region53: #{tpu_custom_call.1} parent=5 // pred_check
        %p548 = pneg %p547
      $region54: #{tpu_custom_call.1} parent=5 // pred_check_branch
        %550 = sbr.rel (%p548) target = $region56
      $region55: #{tpu_custom_call.1} parent=5 // pred_region
        %s551 = ssub.s32 %s23, 2
        // Predicated region
        $region57: #{tpu_custom_call.1} parent=55 // pred_check
          %p552 = pneg %p146
        $region58: #{tpu_custom_call.1} parent=55 // pred_check_branch
          %554 = sbr.rel (%p552) target = $region60
        $region59: #{tpu_custom_call.1} parent=55 // pred_region
          %s555 = sand.u32 %s131, 1
          %s556 = scalar_lea.sflag [#allocation4], %s555
          %s557 = sand.u32 %s131, 1
          %s558 = smul.addr %s557, 8
          %s559 = scalar_lea.vmem [#allocation8], %s558
          %560 = dma.done %s556, 128
        $region60: #{tpu_custom_call.1} parent=55 // pred_fallthru
          _
        // Predicated region
        $region61: #{tpu_custom_call.1} parent=55 // pred_check
          %p561 = pneg %p174
        $region62: #{tpu_custom_call.1} parent=55 // pred_check_branch
          %563 = sbr.rel (%p561) target = $region64
        $region63: #{tpu_custom_call.1} parent=55 // pred_region
          %s564 = sand.u32 %s159, 1
          %s565 = scalar_lea.sflag [#allocation10], %s564
          %s566 = sand.u32 %s159, 1
          %s567 = smul.addr %s566, 8
          %s568 = scalar_lea.vmem [#allocation9], %s567
          %569 = dma.done %s565, 128
        $region64: #{tpu_custom_call.1} parent=55 // pred_fallthru
          _
      $region56: #{tpu_custom_call.1} parent=5 // pred_fallthru
        _
    $region6: #{tpu_custom_call.1} parent=1 // loop_footer
      %s27 = sadd.s32 1, %s23
    $region7: #{tpu_custom_call.1} parent=1 // loop_footer_branch
      %22 = sbr.rel target = $region3
    $region8: #{tpu_custom_call.1} parent=1 // loop_exit
      _
    %570 = vsyncpa [#allocation3], 1
    %s571 = scalar_lea.sflag [#allocation3], 1
    %572 = vsyncpa %s571, 1
    %573 = vsyncpa [#allocation6], 1
    %s574 = scalar_lea.sflag [#allocation6], 1
    %575 = vsyncpa %s574, 1
    %576 = vsyncpa [#allocation4], 1
    %s577 = scalar_lea.sflag [#allocation4], 1
    %578 = vsyncpa %s577, 1
    %579 = vsyncpa [#allocation10], 1
    %s580 = scalar_lea.sflag [#allocation10], 1
    %581 = vsyncpa %s580, 1

</llo_original>
